<compile_context>
chip_gen: v6e
topology: v6e:2x2x1
jax: 0.10.0
libtpu: 0.0.40
codegen_flags: <defaults>
</compile_context>

<pallas_src>
import functools
import math

import jax
import jax.numpy as jnp
from jax.experimental import pallas as pl
from jax.experimental.pallas import tpu as pltpu


def _round_up(a, b):
    return ((a + b - 1) // b) * b


def _linear_kernel(x_ref, w_ref, b_ref, o_ref, *, compute_dtype):
    """One (tm, tn) output tile; full-K contraction (no reduction grid axis)."""
    x = x_ref[...]
    w = w_ref[...]
    if compute_dtype is not None:
        # In-kernel cast: rides spare VPU slots, avoids an extra HBM pass.
        x = x.astype(compute_dtype)
        w = w.astype(compute_dtype)
    acc = jnp.dot(x, w, preferred_element_type=jnp.float32)
    o_ref[...] = (acc + b_ref[...].astype(jnp.float32)).astype(o_ref.dtype)


def _linear_kernel_kred(x_ref, w_ref, b_ref, o_ref, acc_ref, *, compute_dtype):
    """One (tm, tn) output tile with a K-reduction grid axis (axis 2)."""
    k = pl.program_id(2)

    @pl.when(k == 0)
    def _():
        # Init accumulator with the bias -> finalize is just a cast + store.
        acc_ref[...] = jnp.broadcast_to(
            b_ref[...].astype(jnp.float32), acc_ref.shape)

    x = x_ref[...]
    w = w_ref[...]
    if compute_dtype is not None:
        x = x.astype(compute_dtype)
        w = w.astype(compute_dtype)
    acc_ref[...] += jnp.dot(x, w, preferred_element_type=jnp.float32)

    @pl.when(k == pl.num_programs(2) - 1)
    def _():
        o_ref[...] = acc_ref[...].astype(o_ref.dtype)


def _vmem_capacity_bytes():
    try:
        return int(pltpu.get_tpu_info().vmem_capacity_bytes)
    except Exception:
        return 64 * 1024 * 1024  # conservative (v7x per-TC VMEM)


def feature_embedding(x, w, b, *, matmul_dtype=None, out_dtype=None):
    """y = x @ w + b.

    x: (..., num_features) activations
    w: (num_features, embed_size)  -- torch Linear weight, transposed
    b: (embed_size,)
    matmul_dtype: optional in-kernel operand cast (e.g. jnp.bfloat16); default
                  None keeps exact f32 numerics of the nn.Linear spec.
    out_dtype:    optional output dtype (bf16 halves the largest HBM stream).
    """
    orig_shape = x.shape
    K = orig_shape[-1]
    N = w.shape[1]
    M = 1
    for d in orig_shape[:-1]:
        M *= d
    out_dtype = out_dtype or x.dtype

    x2 = x.reshape(M, K)
    b2 = b.reshape(1, N)

    out_item = jnp.dtype(out_dtype).itemsize
    cost = pl.CostEstimate(
        flops=2 * M * N * K,
        transcendentals=0,
        bytes_accessed=(x2.size * x2.dtype.itemsize
                        + w.size * w.dtype.itemsize
                        + b2.size * b2.dtype.itemsize
                        + M * N * out_item),
    )

    kernel = functools.partial(_linear_kernel, compute_dtype=matmul_dtype)

    # ---------------------------------------------------------------------
    # Fast path (the normal case for this module): everything fits a single
    # block.  Exact-dim blocks are exempt from the (8, 128) divisibility rule,
    # so there is no padding, no slicing, no accumulator scratch and exactly
    # one grid step.
    # ---------------------------------------------------------------------
    if M <= 1024 and K <= 2048 and N <= 2048:
        out = pl.pallas_call(
            kernel,
            grid=(1,),
            out_shape=jax.ShapeDtypeStruct((M, N), out_dtype),
            in_specs=[
                pl.BlockSpec((M, K), lambda i: (0, 0)),
                pl.BlockSpec((K, N), lambda i: (0, 0)),
                pl.BlockSpec((1, N), lambda i: (0, 0)),
            ],
            out_specs=pl.BlockSpec((M, N), lambda i: (0, 0)),
            compiler_params=pltpu.CompilerParams(
                dimension_semantics=("arbitrary",)),
            cost_estimate=cost,
        )(x2, w, b2)
        return out.reshape(*orig_shape[:-1], N)

    # ---------------------------------------------------------------------
    # Tiled path for large M (and/or large K / N).
    # ---------------------------------------------------------------------
    vmem_bytes = _vmem_capacity_bytes()
    # Generation-aware scoped-VMEM limit: ~48 MiB on v7x (64 MiB physical),
    # ~96 MiB on v5e/v6e (128 MiB physical).
    vmem_limit = min(int(vmem_bytes * 0.75), 100 * 1024 * 1024)

    # N tile: 128-lane multiples -> lane-dense stores (boundary block masked).
    tn = min(512, _round_up(N, 128))

    # K: keep the full contraction inside one block whenever possible (no
    # accumulator scratch, no init/finalize).  Only a huge K falls back to a
    # reduction grid axis, which requires zero-padding the contraction dim.
    k_tiled = K > 2048
    tk = 1024 if k_tiled else K

    # M tile: the biggest block the VMEM budget allows (big tiles hit the HBM
    # roofline; per-step overhead amortizes).  Multiple of 16 rows keeps bf16
    # sublane packing dense.  No forced split: single-TC chips (v5e/v6e) see a
    # sequential grid anyway, and v7x shards the "parallel" M axis whenever
    # cdiv(M, tm) >= 2.
    x_item = x2.dtype.itemsize
    per_row = 2 * (tk * x_item + tn * out_item) + (tn * 4 if k_tiled else 0)
    w_bytes = 2 * (tk * tn * w.dtype.itemsize)
    budget = max(4 * 1024 * 1024, vmem_limit // 3)
    tm = max(16, min(2048, (budget - w_bytes) // max(per_row, 1)))
    tm = max(16, (tm // 16) * 16)

    if not k_tiled:
        grid = (pl.cdiv(M, tm), pl.cdiv(N, tn))
        out = pl.pallas_call(
            kernel,
            grid=grid,
            out_shape=jax.ShapeDtypeStruct((M, N), out_dtype),
            in_specs=[
                pl.BlockSpec((tm, K), lambda i, j: (i, 0)),
                pl.BlockSpec((K, tn), lambda i, j: (0, j)),
                pl.BlockSpec((1, tn), lambda i, j: (0, j)),
            ],
            out_specs=pl.BlockSpec((tm, tn), lambda i, j: (i, j)),
            compiler_params=pltpu.CompilerParams(
                dimension_semantics=("parallel", "parallel"),
                vmem_limit_bytes=vmem_limit,
            ),
            cost_estimate=cost,
        )(x2, w, b2)
        return out.reshape(*orig_shape[:-1], N)

    # Rare fallback: K does not fit one block -> reduction grid axis with an
    # f32 accumulator.  Contraction dim must be zero-padded (never left to
    # boundary masking, since OOB K would contaminate valid outputs).
    Kp = _round_up(K, tk)
    if Kp != K:
        x2 = jnp.pad(x2, ((0, 0), (0, Kp - K)))
        w = jnp.pad(w, ((0, Kp - K), (0, 0)))

    kernel_red = functools.partial(_linear_kernel_kred, compute_dtype=matmul_dtype)
    grid = (pl.cdiv(M, tm), pl.cdiv(N, tn), Kp // tk)
    out = pl.pallas_call(
        kernel_red,
        grid=grid,
        out_shape=jax.ShapeDtypeStruct((M, N), out_dtype),
        in_specs=[
            pl.BlockSpec((tm, tk), lambda i, j, k: (i, k)),
            pl.BlockSpec((tk, tn), lambda i, j, k: (k, j)),
            pl.BlockSpec((1, tn), lambda i, j, k: (0, j)),
        ],
        out_specs=pl.BlockSpec((tm, tn), lambda i, j, k: (i, j)),
        scratch_shapes=[pltpu.VMEM((tm, tn), jnp.float32)],
        compiler_params=pltpu.CompilerParams(
            dimension_semantics=("parallel", "parallel", "arbitrary"),
            vmem_limit_bytes=vmem_limit,
        ),
        cost_estimate=cost,
    )(x2, w, b2)
    return out.reshape(*orig_shape[:-1], N)


if __name__ == "__main__":
    # Small shapes consistent with the module: batch=2, seq=8,
    # num_features=64, embed_size=128.
    num_features, embed_size = 64, 128
    batch, seq = 2, 8

    key = jax.random.PRNGKey(0)
    kx, kw, kb, kx2 = jax.random.split(key, 4)

    x = jax.random.normal(kx, (batch, seq, num_features), jnp.float32)
    # torch nn.Linear default init: U(-1/sqrt(fan_in), 1/sqrt(fan_in)).
    bound = 1.0 / math.sqrt(num_features)
    w = jax.random.uniform(kw, (num_features, embed_size), jnp.float32, -bound, bound)
    b = jax.random.uniform(kb, (embed_size,), jnp.float32, -bound, bound)

    fwd = jax.jit(feature_embedding)

    # 1) Fast path (single block, exact dims) -- exact f32 numerics.
    out = jax.block_until_ready(fwd(x, w, b))
    assert out.shape == (batch, seq, embed_size), out.shape
    ref = x @ w + b
    assert bool(jnp.allclose(out, ref, rtol=1e-5, atol=1e-5)), \
        float(jnp.max(jnp.abs(out - ref)))

    # 2) Tiled path (M > 1024, partial boundary block, no padding of x).
    x_big = jax.random.normal(kx2, (3, 417, num_features), jnp.float32)  # M = 1251
    out_big = jax.block_until_ready(fwd(x_big, w, b))
    ref_big = x_big @ w + b
    assert out_big.shape == (3, 417, embed_size), out_big.shape
    assert bool(jnp.allclose(out_big, ref_big, rtol=1e-5, atol=1e-5)), \
        float(jnp.max(jnp.abs(out_big - ref_big)))

    print("KERNEL_OK")
</pallas_src>

<mosaic_0001>
module attributes {stable_mosaic.version = 11 : i64} {
  func.func @_linear_kernel(%arg0: i32, %arg1: memref<16x64xf32, #tpu.memory_space<vmem>>, %arg2: memref<64x128xf32, #tpu.memory_space<vmem>>, %arg3: memref<1x128xf32, #tpu.memory_space<vmem>>, %arg4: memref<16x128xf32, #tpu.memory_space<vmem>>) attributes {dimension_semantics = [#tpu.dimension_semantics<arbitrary>], iteration_bounds = array<i64: 1>, scalar_prefetch = 0 : i64, scratch_operands = 0 : i64, tpu.core_type = #tpu.core_type<tc>, window_params = [{pipeline_mode = #tpu.pipeline_mode<synchronous>, transform_indices = @transform_0, window_bounds = array<i64: 16, 64>}, {pipeline_mode = #tpu.pipeline_mode<synchronous>, transform_indices = @transform_1, window_bounds = array<i64: 64, 128>}, {pipeline_mode = #tpu.pipeline_mode<synchronous>, transform_indices = @transform_2, window_bounds = array<i64: 1, 128>}, {pipeline_mode = #tpu.pipeline_mode<synchronous>, transform_indices = @transform_3, window_bounds = array<i64: 16, 128>}]} {
    %c0 = arith.constant 0 : index
    %c0_0 = arith.constant 0 : index
    %0 = vector.load %arg1[%c0, %c0_0] : memref<16x64xf32, #tpu.memory_space<vmem>>, vector<16x64xf32>
    %c0_1 = arith.constant 0 : index
    %c0_2 = arith.constant 0 : index
    %1 = vector.load %arg2[%c0_1, %c0_2] : memref<64x128xf32, #tpu.memory_space<vmem>>, vector<64x128xf32>
    %cst = arith.constant dense<0.000000e+00> : vector<16x128xf32>
    %2 = tpu.matmul %0, %1, %cst {dimension_numbers = #tpu.dot_dimension_numbers<[1], [0], [0], [1], [0, 0, 1, 1], [], []>} : vector<16x64xf32>, vector<64x128xf32>, vector<16x128xf32> -> vector<16x128xf32>
    %c0_3 = arith.constant 0 : index
    %c0_4 = arith.constant 0 : index
    %3 = vector.load %arg3[%c0_3, %c0_4] : memref<1x128xf32, #tpu.memory_space<vmem>>, vector<1x128xf32>
    %4 = vector.broadcast %3 : vector<1x128xf32> to vector<16x128xf32>
    %5 = arith.addf %2, %4 : vector<16x128xf32>
    %c0_5 = arith.constant 0 : index
    %c0_6 = arith.constant 0 : index
    %6 = vector.load %arg4[%c0_5, %c0_6] : memref<16x128xf32, #tpu.memory_space<vmem>>, vector<16x128xf32>
    tpu.vector_store %arg4[%c0_5, %c0_6], %5 {strides = array<i32>} : memref<16x128xf32, #tpu.memory_space<vmem>>, vector<16x128xf32>,
    return
  }
  func.func @transform_0(%arg0: i32) -> (i32, i32) {
    %c0_i32 = arith.constant 0 : i32
    %c0_i32_0 = arith.constant 0 : i32
    %c0_i32_1 = arith.constant 0 : i32
    return %c0_i32, %c0_i32_0 : i32, i32
  }
  func.func @transform_1(%arg0: i32) -> (i32, i32) {
    %c0_i32 = arith.constant 0 : i32
    %c0_i32_0 = arith.constant 0 : i32
    %c0_i32_1 = arith.constant 0 : i32
    return %c0_i32, %c0_i32_0 : i32, i32
  }
  func.func @transform_2(%arg0: i32) -> (i32, i32) {
    %c0_i32 = arith.constant 0 : i32
    %c0_i32_0 = arith.constant 0 : i32
    %c0_i32_1 = arith.constant 0 : i32
    return %c0_i32, %c0_i32_0 : i32, i32
  }
  func.func @transform_3(%arg0: i32) -> (i32, i32) {
    %c0_i32 = arith.constant 0 : i32
    %c0_i32_0 = arith.constant 0 : i32
    %c0_i32_1 = arith.constant 0 : i32
    return %c0_i32, %c0_i32_0 : i32, i32
  }
}

</mosaic_0001>

<llo_original>
// kernel: feature_embedding.1
$region0: #{feature_embedding.1}
  #allocation0 [shape = 'u32[]', space=smem, size = 0x4, offset = 0x4, fixed_abs, tag = 'smem constant byte address 0x4 - core index']
  #allocation1 [shape = 'u32[144,128]{1,0:T(1,128)}', space=vmem, size = 0x12000, scoped, tag = 'internal scratch']
  %s0 = inlined_call_operand.hbm [shape: f32[16,64], index: 0, kind: input, shape index: {}]
  %s1 = inlined_call_operand.hbm [shape: f32[64,128], index: 1, kind: input, shape index: {}]
  %s2 = inlined_call_operand.vmem [shape: f32[1,128], index: 2, kind: input, shape index: {}]
  %s3 = inlined_call_operand.hbm [shape: f32[16,128], index: 3, kind: output, shape index: {}]
  %s4 = sld [smem:[#allocation0]]
  $region30: #{feature_embedding.1} parent=0
    _
  %s6 = ssub.s32 1, %s4
  %s7 = scalar_select 0, %s6, %s4
  $region1: #{feature_embedding.1} parent=0
    #allocation2 [shape = 'u8[8192]{0}', space=vmem, size = 0x2000, scoped, tag = 'input window, operand 0, single buffered']
    #allocation3 [shape = 's32[1]{0}', space=sflag, size = 0x4, scoped, tag = 'scoped memory for feature_embedding.1']
    #allocation4 [shape = 's32[1]{0}', space=sflag, size = 0x4, scoped, tag = 'scoped memory for feature_embedding.1']
    #allocation5 [shape = 'u8[32768]{0}', space=vmem, size = 0x8000, scoped, tag = 'input window, operand 1, single buffered']
    #allocation6 [shape = 's32[1]{0}', space=sflag, size = 0x4, scoped, tag = 'scoped memory for feature_embedding.1']
    #allocation7 [shape = 'u8[8192]{0}', space=vmem, size = 0x2000, scoped, tag = 'output window, operand 0, single buffered']
    %8 = vsyncpa [#allocation3], 0
    %9 = vsyncpa [#allocation6], 0
    %10 = vsyncpa [#allocation4], 0
    // Predicated region
    $region2: #{feature_embedding.1} parent=1 // pred_check
      _
    $region3: #{feature_embedding.1} parent=1 // pred_check_branch
      %12 = sbr.rel (0) target = $region5
    $region4: #{feature_embedding.1} parent=1 // pred_region
      %s14 = ssub.s32 256, 256
      %15 = vsyncadd [#allocation3], %s14
      %s16 = sshll.u32 [#allocation2], 4
      %s17 = int_to_ptr.vmem [resolvable:$true] %s16
      %22 = dma.hbm_to_vmem [thread:$0]  %s0, 256, %s17, [#allocation3], 128, 128, 8
    $region5: #{feature_embedding.1} parent=1 // pred_fallthru
      _
    // Predicated region
    $region6: #{feature_embedding.1} parent=1 // pred_check
      _
    $region7: #{feature_embedding.1} parent=1 // pred_check_branch
      %24 = sbr.rel (0) target = $region9
    $region8: #{feature_embedding.1} parent=1 // pred_region
      %s26 = ssub.s32 1024, 1024
      %27 = vsyncadd [#allocation6], %s26
      %s28 = sshll.u32 [#allocation5], 4
      %s29 = int_to_ptr.vmem [resolvable:$true] %s28
      %34 = dma.hbm_to_vmem [thread:$0]  %s1, 1024, %s29, [#allocation6], 128, 128, 8
    $region9: #{feature_embedding.1} parent=1 // pred_fallthru
      _
    // Predicated region
    $region10: #{feature_embedding.1} parent=1 // pred_check
      _
    $region11: #{feature_embedding.1} parent=1 // pred_check_branch
      %36 = sbr.rel (0) target = $region13
    $region12: #{feature_embedding.1} parent=1 // pred_region
      _
    $region13: #{feature_embedding.1} parent=1 // pred_fallthru
      _
    // Predicated region
    $region14: #{feature_embedding.1} parent=1 // pred_check
      _
    $region15: #{feature_embedding.1} parent=1 // pred_check_branch
      %38 = sbr.rel (0) target = $region17
    $region16: #{feature_embedding.1} parent=1 // pred_region
      %39 = dma.done [#allocation3], 256
    $region17: #{feature_embedding.1} parent=1 // pred_fallthru
      _
    // Predicated region
    $region18: #{feature_embedding.1} parent=1 // pred_check
      _
    $region19: #{feature_embedding.1} parent=1 // pred_check_branch
      %41 = sbr.rel (0) target = $region21
    $region20: #{feature_embedding.1} parent=1 // pred_region
      %42 = dma.done [#allocation6], 1024
    $region21: #{feature_embedding.1} parent=1 // pred_fallthru
      _
    %v43 = vld [vmem:[#allocation2] sm:$0xff]
    %v44 = vld [vmem:[#allocation2 + $0x8] sm:$0xff]
    %v45 = vld [vmem:[#allocation5] sm:$0xff]
    %v46 = vld [vmem:[#allocation5 + $0x8] sm:$0xff]
    %v47 = vld [vmem:[#allocation5 + $0x10] sm:$0xff]
    %v48 = vld [vmem:[#allocation5 + $0x18] sm:$0xff]
    %v49 = vld [vmem:[#allocation5 + $0x20] sm:$0xff]
    %v50 = vld [vmem:[#allocation5 + $0x28] sm:$0xff]
    %v51 = vld [vmem:[#allocation5 + $0x30] sm:$0xff]
    %v52 = vld [vmem:[#allocation5 + $0x38] sm:$0xff]
    %v53 = vld [vmem:[%s2] sm:$0x1]
    %v55 = vlaneseq
    %v56 = vshrl.u32 %v55, 7
    %v57 = vsub.s32 0, %v56
    %v58 = vrot.slane %v53, %v57
    %vm60 = vcmask 523264
    %v62 = vsel %vm60, %v43, 0
    %v65 = vsel %vm60, %v44, 0
    %67 = vmatprep.subr.mxu0 0.0
    %68 = vmatpush1.msra.mxu0 0.0
    %69 = vmatprep.subr.mxu0 0.0
    %70 = vmatpush1.msra.mxu0 0.0
    %71 = vmatprep.subr.mxu0 0.0
    %72 = vmatpush1.msra.mxu0 0.0
    %73 = vmatprep.subr.mxu0 0.0
    %74 = vmatpush1.msra.mxu0 0.0
    %75 = vmatprep.subr.mxu0 0.0
    %76 = vmatpush1.msra.mxu0 0.0
    %77 = vmatprep.subr.mxu0 0.0
    %78 = vmatpush1.msra.mxu0 0.0
    %79 = vmatprep.subr.mxu0 0.0
    %80 = vmatpush1.msra.mxu0 0.0
    %81 = vmatprep.subr.mxu0 0.0
    %82 = vmatpush1.msra.mxu0 0.0
    %83 = vmatprep.subr.mxu0 0.0
    %84 = vmatpush1.msra.mxu0 %v52
    %85 = vmatprep.subr.mxu0 0.0
    %86 = vmatpush1.msra.mxu0 %v51
    %87 = vmatprep.subr.mxu0 0.0
    %88 = vmatpush1.msra.mxu0 %v50
    %89 = vmatprep.subr.mxu0 0.0
    %90 = vmatpush1.msra.mxu0 %v49
    %91 = vmatprep.subr.mxu0 0.0
    %92 = vmatpush1.msra.mxu0 %v48
    %93 = vmatprep.subr.mxu0 0.0
    %94 = vmatpush1.msra.mxu0 %v47
    %95 = vmatprep.subr.mxu0 0.0
    %96 = vmatpush1.msra.mxu0 %v46
    %97 = vmatprep.subr.mxu0 0.0
    %98 = vmatpush1.msra.mxu0 %v45
    %99 = vmatprep.subr.mxu0 0.0
    %100 = vmatpush2.msra.mxu0 0.0
    %101 = vmatprep.subr.mxu0 0.0
    %102 = vmatpush2.msra.mxu0 0.0
    %103 = vmatprep.subr.mxu0 0.0
    %104 = vmatpush2.msra.mxu0 0.0
    %105 = vmatprep.subr.mxu0 0.0
    %106 = vmatpush2.msra.mxu0 0.0
    %107 = vmatprep.subr.mxu0 0.0
    %108 = vmatpush2.msra.mxu0 0.0
    %109 = vmatprep.subr.mxu0 0.0
    %110 = vmatpush2.msra.mxu0 0.0
    %111 = vmatprep.subr.mxu0 0.0
    %112 = vmatpush2.msra.mxu0 0.0
    %113 = vmatprep.subr.mxu0 0.0
    %114 = vmatpush2.msra.mxu0 0.0
    %115 = vmatprep.subr.mxu0 0.0
    %116 = vmatpush2.msra.mxu0 0.0
    %117 = vmatprep.subr.mxu0 0.0
    %118 = vmatpush2.msra.mxu0 0.0
    %119 = vmatprep.subr.mxu0 0.0
    %120 = vmatpush2.msra.mxu0 0.0
    %121 = vmatprep.subr.mxu0 0.0
    %122 = vmatpush2.msra.mxu0 0.0
    %123 = vmatprep.subr.mxu0 0.0
    %124 = vmatpush2.msra.mxu0 0.0
    %125 = vmatprep.subr.mxu0 0.0
    %126 = vmatpush2.msra.mxu0 0.0
    %127 = vmatprep.subr.mxu0 0.0
    %128 = vmatpush2.msra.mxu0 0.0
    %129 = vmatprep.subr.mxu0 0.0
    %130 = vmatpush2.msra.mxu0 0.0
    %131 = vmatprep.mubr.f32.mxu0 0.0
    %132 = vmatmul.mubr.f32.gmra.mxu0 %v62
    %v133 = vpop.f32.mrf.mxu0
    %v134 = vadd.f32 %v58, %v133
    %v135 = vpop.f32.mrf.mxu0
    %136 = vmatprep.mubr.f32.mxu0 0.0
    %137 = vmatmul.mubr.f32.gmra.mxu0 %v65
    %v138 = vpop.f32.mrf.mxu0
    %v139 = vadd.f32 %v58, %v138
    %v140 = vpop.f32.mrf.mxu0
    %141 = vdwg.mxu0
    %142 = vst [vmem:[#allocation7] sm:$0xff] %v134
    %143 = vst [vmem:[#allocation7 + $0x8] sm:$0xff] %v139
    // Predicated region
    $region22: #{feature_embedding.1} parent=1 // pred_check
      _
    $region23: #{feature_embedding.1} parent=1 // pred_check_branch
      %145 = sbr.rel (0) target = $region25
    $region24: #{feature_embedding.1} parent=1 // pred_region
      %s147 = ssub.s32 256, 256
      %148 = vsyncadd [#allocation4], %s147
      %s149 = sshll.u32 [#allocation7], 4
      %s150 = int_to_ptr.vmem [resolvable:$true] %s149
      %155 = dma.vmem_to_hbm [thread:$0]  %s150, 256, %s3, [#allocation4], 128, 128, 8
    $region25: #{feature_embedding.1} parent=1 // pred_fallthru
      _
    // Predicated region
    $region26: #{feature_embedding.1} parent=1 // pred_check
      _
    $region27: #{feature_embedding.1} parent=1 // pred_check_branch
      %157 = sbr.rel (0) target = $region29
    $region28: #{feature_embedding.1} parent=1 // pred_region
      %158 = dma.done [#allocation4], 256
    $region29: #{feature_embedding.1} parent=1 // pred_fallthru
      _
    %159 = vsyncpa [#allocation3], 1
    %160 = vsyncpa [#allocation6], 1
    %161 = vsyncpa [#allocation4], 1

</llo_original>
